<compile_context>
chip_gen: v7x
topology: tpu7x:2x2x1
jax: 0.10.0
libtpu: 0.0.40
codegen_flags: <defaults>
</compile_context>

<pallas_src>
import jax
import jax.numpy as jnp
from jax.experimental import pallas as pl
from jax.experimental.pallas import tpu as pltpu

_CHUNK = 512      # inner strip width in lanes; intermediates stay in vregs
_SUBLANES = 8     # batch elements stacked on sublanes


# Packed parameter layout (flat f32[16]; last 3 entries are padding):
#   p[2*k + j] = W1[k, j]   (k in 0..3, j in 0..1)
#   p[8 + j]   = b1[j]
#   p[10 + j]  = W2[j, 0]
#   p[12]      = b2[0]
def _mlp_kernel(p_ref, x_ref, o_ref):
    # Scalar params: read once from SMEM, reused by every strip.
    w1_00, w1_01 = p_ref[0], p_ref[1]
    w1_10, w1_11 = p_ref[2], p_ref[3]
    w1_20, w1_21 = p_ref[4], p_ref[5]
    w1_30, w1_31 = p_ref[6], p_ref[7]
    b1_0, b1_1 = p_ref[8], p_ref[9]
    w2_0, w2_1 = p_ref[10], p_ref[11]
    b2_0 = p_ref[12]

    n_strips = x_ref.shape[2] // _CHUNK   # static; tile is a multiple of _CHUNK

    @pl.loop(0, n_strips)
    def _(c):
        off = pl.multiple_of(c * _CHUNK, _CHUNK)
        x = x_ref[:, :, pl.ds(off, _CHUNK)]          # (4, 8, CHUNK) f32
        x0, x1, x2, x3 = x[0], x[1], x[2], x[3]      # each (8, CHUNK), full vregs

        # hidden = relu(x @ W1 + b1), unrolled as scalar*vector FMAs on the VPU.
        h0 = jnp.maximum(
            x0 * w1_00 + x1 * w1_10 + x2 * w1_20 + x3 * w1_30 + b1_0, 0.0)
        h1 = jnp.maximum(
            x0 * w1_01 + x1 * w1_11 + x2 * w1_21 + x3 * w1_31 + b1_1, 0.0)

        # y = sigmoid(h @ W2 + b2) — exact; EUP/VALU have huge slack here.
        z = h0 * w2_0 + h1 * w2_1 + b2_0
        o_ref[:, pl.ds(off, _CHUNK)] = 1.0 / (1.0 + jnp.exp(-z))


def titanic_forward(x, w1, b1, w2, b2, *, tile_rows=131072):
    """x: (N, 4) float -> (N,) float32 (matches y_pred.squeeze(-1))."""
    n = x.shape[0]
    x = x.astype(jnp.float32)

    # Pad batch to a multiple of 8 only (<=7 rows) so (4, N8) -> (4, 8, L) is a
    # free row-major reshape.  No full-array pad; ragged tiles are masked.
    n8 = pl.cdiv(n, _SUBLANES) * _SUBLANES
    if n8 != n:
        x = jnp.pad(x, ((0, n8 - n), (0, 0)))
    L = n8 // _SUBLANES

    # TODO(synk): if the producer can emit feature-major (4, 8, L) data directly,
    # pass it through and skip this transpose — it is the only non-kernel HBM traffic.
    xr = jnp.transpose(x).reshape(4, _SUBLANES, L)   # batch on sublanes AND lanes

    # ---- tile selection (lanes per grid step; rows/step = 8 * lanes) ----
    lanes = max(_CHUNK, tile_rows // _SUBLANES)
    l_ceil = pl.cdiv(L, _CHUNK) * _CHUNK
    lanes = min(lanes, l_ceil)
    if l_ceil >= 2 * _CHUNK:
        # keep >= 2 grid steps so "parallel" can shard over v7x's 2nd TensorCore
        lanes = min(lanes, pl.cdiv(pl.cdiv(l_ceil, 2), _CHUNK) * _CHUNK)
    lanes = max(_CHUNK, pl.cdiv(lanes, _CHUNK) * _CHUNK)

    # One packed SMEM parameter vector instead of 5 padded VMEM operands.
    params = jnp.concatenate([
        w1.reshape(-1),     # 8 scalars
        b1.reshape(-1),     # 2
        w2.reshape(-1),     # 2
        b2.reshape(-1),     # 1
    ]).astype(jnp.float32)
    params = jnp.pad(params, (0, 16 - params.shape[0]))   # (16,)

    out = pl.pallas_call(
        _mlp_kernel,
        out_shape=jax.ShapeDtypeStruct((_SUBLANES, L), jnp.float32),
        grid=(pl.cdiv(L, lanes),),
        in_specs=[
            pl.BlockSpec(memory_space=pltpu.SMEM),                 # packed params
            pl.BlockSpec((4, _SUBLANES, lanes), lambda i: (0, 0, i)),  # x tile
        ],
        out_specs=pl.BlockSpec((_SUBLANES, lanes), lambda i: (0, i)),
        compiler_params=pltpu.CompilerParams(
            dimension_semantics=("parallel",),
            vmem_limit_bytes=32 * 1024 * 1024,
        ),
        cost_estimate=pl.CostEstimate(
            flops=25 * n, transcendentals=n, bytes_accessed=20 * n),
    )(params, xr)

    # (8, L) -> (N8,) is a free row-major reshape; drop the <=7-row batch pad.
    return out.reshape(n8)[:n]


def _init_params(key):
    """Deterministic init mimicking torch.nn.Linear defaults:
    U(-1/sqrt(fan_in), 1/sqrt(fan_in)) for weight and bias."""
    k1, k2, k3, k4 = jax.random.split(key, 4)
    bound1 = 1.0 / jnp.sqrt(4.0)
    bound2 = 1.0 / jnp.sqrt(2.0)
    # Stored as (in_features, out_features) so the math is x @ W + b.
    w1 = jax.random.uniform(k1, (4, 2), jnp.float32, -bound1, bound1)
    b1 = jax.random.uniform(k2, (2,), jnp.float32, -bound1, bound1)
    w2 = jax.random.uniform(k3, (2, 1), jnp.float32, -bound2, bound2)
    b2 = jax.random.uniform(k4, (1,), jnp.float32, -bound2, bound2)
    return w1, b1, w2, b2


def _reference(x, w1, b1, w2, b2):
    h = jnp.maximum(x.astype(jnp.float32) @ w1 + b1, 0.0)
    return jax.nn.sigmoid(h @ w2 + b2)[:, 0]


if __name__ == "__main__":
    key = jax.random.PRNGKey(0)
    kx, kp = jax.random.split(key)

    # Small "Titanic"-scale batch: (N=6000, features=4). N is a multiple of 8
    # (no batch pad), ragged against the 512-lane tile, and spans 2 grid steps.
    n = 6000
    x = jax.random.normal(kx, (n, 4), jnp.float32)
    w1, b1, w2, b2 = _init_params(kp)

    y = jax.block_until_ready(titanic_forward(x, w1, b1, w2, b2))
    y_ref = _reference(x, w1, b1, w2, b2)

    assert y.shape == (n,)
    err = float(jnp.max(jnp.abs(y - y_ref)))
    assert jnp.allclose(y, y_ref, atol=1e-5, rtol=1e-5), err

    print("KERNEL_OK")
</pallas_src>

<mosaic_0001>
module attributes {stable_mosaic.version = 11 : i64} {
  func.func @_mlp_kernel(%arg0: i32, %arg1: memref<16xf32, #tpu.memory_space<smem>>, %arg2: memref<4x8x512xf32, #tpu.memory_space<vmem>>, %arg3: memref<8x512xf32, #tpu.memory_space<vmem>>) attributes {dimension_semantics = [#tpu.dimension_semantics<parallel>], iteration_bounds = array<i64: 2>, scalar_prefetch = 0 : i64, scratch_operands = 0 : i64, tpu.core_type = #tpu.core_type<tc>, window_params = [{transform_indices = @transform_0, window_bounds = array<i64: 16>}, {transform_indices = @transform_1, window_bounds = array<i64: 4, 8, 512>}, {transform_indices = @transform_2, window_bounds = array<i64: 8, 512>}]} {
    %c0 = arith.constant 0 : index
    %0 = memref.load %arg1[%c0] : memref<16xf32, #tpu.memory_space<smem>>
    %c1 = arith.constant 1 : index
    %1 = memref.load %arg1[%c1] : memref<16xf32, #tpu.memory_space<smem>>
    %c2 = arith.constant 2 : index
    %2 = memref.load %arg1[%c2] : memref<16xf32, #tpu.memory_space<smem>>
    %c3 = arith.constant 3 : index
    %3 = memref.load %arg1[%c3] : memref<16xf32, #tpu.memory_space<smem>>
    %c4 = arith.constant 4 : index
    %4 = memref.load %arg1[%c4] : memref<16xf32, #tpu.memory_space<smem>>
    %c5 = arith.constant 5 : index
    %5 = memref.load %arg1[%c5] : memref<16xf32, #tpu.memory_space<smem>>
    %c6 = arith.constant 6 : index
    %6 = memref.load %arg1[%c6] : memref<16xf32, #tpu.memory_space<smem>>
    %c7 = arith.constant 7 : index
    %7 = memref.load %arg1[%c7] : memref<16xf32, #tpu.memory_space<smem>>
    %c8 = arith.constant 8 : index
    %8 = memref.load %arg1[%c8] : memref<16xf32, #tpu.memory_space<smem>>
    %c9 = arith.constant 9 : index
    %9 = memref.load %arg1[%c9] : memref<16xf32, #tpu.memory_space<smem>>
    %c10 = arith.constant 10 : index
    %10 = memref.load %arg1[%c10] : memref<16xf32, #tpu.memory_space<smem>>
    %c11 = arith.constant 11 : index
    %11 = memref.load %arg1[%c11] : memref<16xf32, #tpu.memory_space<smem>>
    %c12 = arith.constant 12 : index
    %12 = memref.load %arg1[%c12] : memref<16xf32, #tpu.memory_space<smem>>
    %c0_i32 = arith.constant 0 : i32
    %c1_i32 = arith.constant 1 : i32
    %13 = arith.muli %c0_i32, %c1_i32 : i32
    %c0_i32_0 = arith.constant 0 : i32
    %14 = arith.addi %c0_i32_0, %13 : i32
    %c512_i32 = arith.constant 512 : i32
    %15 = arith.muli %14, %c512_i32 : i32
    %16 = tpu.assume_multiple %15, 512 : i32
    %c0_1 = arith.constant 0 : index
    %c0_2 = arith.constant 0 : index
    %17 = arith.index_cast %16 : i32 to index
    %18 = vector.load %arg2[%c0_1, %c0_2, %17] : memref<4x8x512xf32, #tpu.memory_space<vmem>>, vector<4x8x512xf32>
    %19 = vector.extract_strided_slice %18 {offsets = [0, 0, 0], sizes = [1, 8, 512], strides = [1, 1, 1]} : vector<4x8x512xf32> to vector<1x8x512xf32>
    %20 = vector.shape_cast %19 : vector<1x8x512xf32> to vector<8x512xf32>
    %21 = vector.extract_strided_slice %18 {offsets = [1, 0, 0], sizes = [1, 8, 512], strides = [1, 1, 1]} : vector<4x8x512xf32> to vector<1x8x512xf32>
    %22 = vector.shape_cast %21 : vector<1x8x512xf32> to vector<8x512xf32>
    %23 = vector.extract_strided_slice %18 {offsets = [2, 0, 0], sizes = [1, 8, 512], strides = [1, 1, 1]} : vector<4x8x512xf32> to vector<1x8x512xf32>
    %24 = vector.shape_cast %23 : vector<1x8x512xf32> to vector<8x512xf32>
    %25 = vector.extract_strided_slice %18 {offsets = [3, 0, 0], sizes = [1, 8, 512], strides = [1, 1, 1]} : vector<4x8x512xf32> to vector<1x8x512xf32>
    %26 = vector.shape_cast %25 : vector<1x8x512xf32> to vector<8x512xf32>
    %27 = vector.broadcast %0 : f32 to vector<8x512xf32>
    %28 = arith.mulf %20, %27 : vector<8x512xf32>
    %29 = vector.broadcast %2 : f32 to vector<8x512xf32>
    %30 = arith.mulf %22, %29 : vector<8x512xf32>
    %31 = arith.addf %28, %30 : vector<8x512xf32>
    %32 = vector.broadcast %4 : f32 to vector<8x512xf32>
    %33 = arith.mulf %24, %32 : vector<8x512xf32>
    %34 = arith.addf %31, %33 : vector<8x512xf32>
    %35 = vector.broadcast %6 : f32 to vector<8x512xf32>
    %36 = arith.mulf %26, %35 : vector<8x512xf32>
    %37 = arith.addf %34, %36 : vector<8x512xf32>
    %38 = vector.broadcast %8 : f32 to vector<8x512xf32>
    %39 = arith.addf %37, %38 : vector<8x512xf32>
    %cst = arith.constant 0.000000e+00 : f32
    %40 = vector.broadcast %cst : f32 to vector<8x512xf32>
    %41 = arith.maximumf %39, %40 : vector<8x512xf32>
    %42 = vector.broadcast %1 : f32 to vector<8x512xf32>
    %43 = arith.mulf %20, %42 : vector<8x512xf32>
    %44 = vector.broadcast %3 : f32 to vector<8x512xf32>
    %45 = arith.mulf %22, %44 : vector<8x512xf32>
    %46 = arith.addf %43, %45 : vector<8x512xf32>
    %47 = vector.broadcast %5 : f32 to vector<8x512xf32>
    %48 = arith.mulf %24, %47 : vector<8x512xf32>
    %49 = arith.addf %46, %48 : vector<8x512xf32>
    %50 = vector.broadcast %7 : f32 to vector<8x512xf32>
    %51 = arith.mulf %26, %50 : vector<8x512xf32>
    %52 = arith.addf %49, %51 : vector<8x512xf32>
    %53 = vector.broadcast %9 : f32 to vector<8x512xf32>
    %54 = arith.addf %52, %53 : vector<8x512xf32>
    %cst_3 = arith.constant 0.000000e+00 : f32
    %55 = vector.broadcast %cst_3 : f32 to vector<8x512xf32>
    %56 = arith.maximumf %54, %55 : vector<8x512xf32>
    %57 = vector.broadcast %10 : f32 to vector<8x512xf32>
    %58 = arith.mulf %41, %57 : vector<8x512xf32>
    %59 = vector.broadcast %11 : f32 to vector<8x512xf32>
    %60 = arith.mulf %56, %59 : vector<8x512xf32>
    %61 = arith.addf %58, %60 : vector<8x512xf32>
    %62 = vector.broadcast %12 : f32 to vector<8x512xf32>
    %63 = arith.addf %61, %62 : vector<8x512xf32>
    %cst_4 = arith.constant 0.000000e+00 : f32
    %64 = vector.broadcast %cst_4 : f32 to vector<8x512xf32>
    %65 = arith.subf %64, %63 : vector<8x512xf32>
    %66 = math.exp %65 : vector<8x512xf32>
    %cst_5 = arith.constant 1.000000e+00 : f32
    %67 = vector.broadcast %cst_5 : f32 to vector<8x512xf32>
    %68 = arith.addf %67, %66 : vector<8x512xf32>
    %cst_6 = arith.constant 1.000000e+00 : f32
    %69 = vector.broadcast %cst_6 : f32 to vector<8x512xf32>
    %70 = arith.divf %69, %68 : vector<8x512xf32>
    %c0_7 = arith.constant 0 : index
    %71 = arith.index_cast %16 : i32 to index
    %72 = vector.load %arg3[%c0_7, %71] : memref<8x512xf32, #tpu.memory_space<vmem>>, vector<8x512xf32>
    tpu.vector_store %arg3[%c0_7, %71], %70 {strides = array<i32>} : memref<8x512xf32, #tpu.memory_space<vmem>>, vector<8x512xf32>,
    %c1_i32_8 = arith.constant 1 : i32
    return
  }
  func.func @transform_0(%arg0: i32) -> i32 {
    %c0_i32 = arith.constant 0 : i32
    %c0_i32_0 = arith.constant 0 : i32
    return %c0_i32 : i32
  }
  func.func @transform_1(%arg0: i32) -> (i32, i32, i32) {
    %c0_i32 = arith.constant 0 : i32
    %c0_i32_0 = arith.constant 0 : i32
    %c0_i32_1 = arith.constant 0 : i32
    return %c0_i32, %c0_i32_0, %arg0 : i32, i32, i32
  }
  func.func @transform_2(%arg0: i32) -> (i32, i32) {
    %c0_i32 = arith.constant 0 : i32
    %c0_i32_0 = arith.constant 0 : i32
    return %c0_i32, %arg0 : i32, i32
  }
}

</mosaic_0001>

<llo_original>
// kernel: tpu_custom_call.1
$region0: #{tpu_custom_call.1}
  #allocation0 [shape = 'u32[]', space=smem, size = 0x4, offset = 0x4, fixed_abs, tag = 'smem constant byte address 0x4 - core index']
  #allocation1 [shape = 'u32[144,128]{1,0:T(1,128)}', space=vmem, size = 0x12000, scoped, tag = 'internal scratch']
  %s0 = inlined_call_operand.hbm [shape: f32[16], index: 0, kind: input, shape index: {}]
  %s1 = inlined_call_operand.hbm [shape: f32[4,8,750], index: 1, kind: input, shape index: {}]
  %s2 = inlined_call_operand.hbm [shape: f32[8,750], index: 2, kind: output, shape index: {}]
  %s3 = sld [smem:[#allocation0]]
  $region49: #{tpu_custom_call.1} parent=0
    _
  %s5 = ssub.s32 1, %s3
  %s6 = scalar_select 0, %s5, %s3
  $region1: #{tpu_custom_call.1} parent=0
    #allocation2 [shape = 'u8[512]{0}', space=smem, size = 0x200, scoped, tag = 'input window, operand 0, single buffered']
    #allocation3 [shape = 's32[2]{0}', space=sflag, size = 0x8, scoped, tag = 'scoped memory for tpu_custom_call.1']
    #allocation4 [shape = 's32[2]{0}', space=sflag, size = 0x8, scoped, tag = 'scoped memory for tpu_custom_call.1']
    #allocation5 [shape = 's32[2]{0}', space=sflag, size = 0x8, scoped, tag = 'scoped memory for tpu_custom_call.1']
    #allocation6 [shape = 'u8[131072]{0}', space=vmem, size = 0x20000, scoped, tag = 'input window, operand 1']
    #allocation7 [shape = 'u8[32768]{0}', space=vmem, size = 0x8000, scoped, tag = 'output window, operand 0']
    %7 = vsyncpa [#allocation5], 0
    %8 = vsyncpa [#allocation3], 0
    %s9 = scalar_lea.sflag [#allocation3], 1
    %10 = vsyncpa %s9, 0
    %11 = vsyncpa [#allocation4], 0
    %s12 = scalar_lea.sflag [#allocation4], 1
    %13 = vsyncpa %s12, 0
    loop: start=0, step=1, limit=4
    $region2: #{tpu_custom_call.1} parent=1 // loop_pre_header
      _
    $region3: #{tpu_custom_call.1} parent=1 // loop_header
      %s15 = sphi 0, %s19
      %p16 = scmp.ge.s32.totalorder %s15, 4
      %s23 = sphi 0, %s23
      %s25 = sphi 0, %s23
      %s26 = sphi 0, %s25
      %s40 = sphi 0, %s26
      %s46 = sphi 0, %s48
      %s49 = sphi 0, %s46
      %s50 = sphi 0, %s49
      %s66 = sphi 0, %s50
      %s72 = sphi 0, %s74
      %s75 = sphi 0, %s72
      %s76 = sphi 0, %s75
      %s92 = sphi 0, %s76
    $region4: #{tpu_custom_call.1} parent=1 // loop_header_branch
      %18 = sbr.rel (%p16) target = $region8
    $region5: #{tpu_custom_call.1} parent=1 // loop_body
      %s20 = ssub.s32 %s15, 1
      %s21 = ssub.s32 %s15, 2
      %s22 = sadd.s32 %s15, 1
      %s24 = sadd.s32 %s23, 1
      %p27 = scmp.eq.s32.totalorder %s15, 1
      %p28 = scmp.ne.s32.totalorder %s23, %s25
      %p29 = scmp.eq.s32.totalorder %s15, 0
      %p30 = por %p28, %p29
      %p31 = scmp.ne.s32.totalorder %s23, %s25
      %p32 = scmp.eq.s32.totalorder %s20, 1
      %p33 = por %p31, %p32
      %p34 = scmp.ne.s32.totalorder %s25, %s26
      %p35 = scmp.eq.s32.totalorder %s20, 0
      %p36 = por %p34, %p35
      %p37 = scmp.ne.s32.totalorder %s25, %s26
      %p38 = scmp.eq.s32.totalorder %s21, 1
      %p39 = por %p37, %p38
      %p41 = scmp.ne.s32.totalorder %s26, %s40
      %p42 = scmp.eq.s32.totalorder %s21, 0
      %p43 = por %p41, %p42
      %s44 = ssub.s32 %s15, %s22
      %p45 = scmp.eq.s32.totalorder %s44, 0
      %s47 = sadd.s32 %s46, 1
      %s48 = scalar_select %p45, %s46, %s47
      %p51 = pneg %p45
      %p52 = scmp.eq.s32.totalorder %s15, 1
      %p53 = por %p51, %p52
      %p54 = scmp.ne.s32.totalorder %s46, %s49
      %p55 = scmp.eq.s32.totalorder %s15, 0
      %p56 = por %p54, %p55
      %p57 = scmp.ne.s32.totalorder %s46, %s49
      %p58 = scmp.eq.s32.totalorder %s20, 1
      %p59 = por %p57, %p58
      %p60 = scmp.ne.s32.totalorder %s49, %s50
      %p61 = scmp.eq.s32.totalorder %s20, 0
      %p62 = por %p60, %p61
      %p63 = scmp.ne.s32.totalorder %s49, %s50
      %p64 = scmp.eq.s32.totalorder %s21, 1
      %p65 = por %p63, %p64
      %p67 = scmp.ne.s32.totalorder %s50, %s66
      %p68 = scmp.eq.s32.totalorder %s21, 0
      %p69 = por %p67, %p68
      %s70 = ssub.s32 %s15, %s22
      %p71 = scmp.eq.s32.totalorder %s70, 0
      %s73 = sadd.s32 %s72, 1
      %s74 = scalar_select %p71, %s72, %s73
      %p77 = pneg %p71
      %p78 = scmp.eq.s32.totalorder %s15, 1
      %p79 = por %p77, %p78
      %p80 = scmp.ne.s32.totalorder %s72, %s75
      %p81 = scmp.eq.s32.totalorder %s15, 0
      %p82 = por %p80, %p81
      %p83 = scmp.ne.s32.totalorder %s72, %s75
      %p84 = scmp.eq.s32.totalorder %s20, 1
      %p85 = por %p83, %p84
      %p86 = scmp.ne.s32.totalorder %s75, %s76
      %p87 = scmp.eq.s32.totalorder %s20, 0
      %p88 = por %p86, %p87
      %p89 = scmp.ne.s32.totalorder %s75, %s76
      %p90 = scmp.eq.s32.totalorder %s21, 1
      %p91 = por %p89, %p90
      %p93 = scmp.ne.s32.totalorder %s76, %s92
      %p94 = scmp.eq.s32.totalorder %s21, 0
      %p95 = por %p93, %p94
      %p96 = scmp.le.s32.totalorder 1, %s15
      %p97 = scmp.lt.s32.totalorder %s15, 3
      %p98 = pnand %p96, %p97
      %p99 = pneg %p98
      // Predicated region
      $region9: #{tpu_custom_call.1} parent=5 // pred_check
        _
      $region10: #{tpu_custom_call.1} parent=5 // pred_check_branch
        %101 = sbr.rel (%p98) target = $region12
      $region11: #{tpu_custom_call.1} parent=5 // pred_region
        %s102 = ssub.s32 %s15, 1
        // Predicated region
        $region13: #{tpu_custom_call.1} parent=11 // pred_check
          %p103 = pneg %p36
        $region14: #{tpu_custom_call.1} parent=11 // pred_check_branch
          %105 = sbr.rel (%p103) target = $region16
        $region15: #{tpu_custom_call.1} parent=11 // pred_region
          %s107 = ssub.s32 16, 16
          %108 = vsyncadd [#allocation5], %s107
          %111 = dma.hbm_to_smem %s0, 16, [#allocation2], [#allocation5]
        $region16: #{tpu_custom_call.1} parent=11 // pred_fallthru
          _
      $region12: #{tpu_custom_call.1} parent=5 // pred_fallthru
        _
      %p112 = scmp.lt.s32.totalorder %s15, 2
      // Predicated region
      $region17: #{tpu_custom_call.1} parent=5 // pred_check
        %p113 = pneg %p112
      $region18: #{tpu_custom_call.1} parent=5 // pred_check_branch
        %115 = sbr.rel (%p113) target = $region20
      $region19: #{tpu_custom_call.1} parent=5 // pred_region
        // Predicated region
        $region21: #{tpu_custom_call.1} parent=19 // pred_check
          %p116 = pneg %p56
        $region22: #{tpu_custom_call.1} parent=19 // pred_check_branch
          %118 = sbr.rel (%p116) target = $region24
        $region23: #{tpu_custom_call.1} parent=19 // pred_region
          %s119 = sand.u32 %s46, 1
          %s120 = scalar_lea.sflag [#allocation3], %s119
          %s121 = sand.u32 %s46, 1
          %s122 = smul.addr %s121, 128
          %s123 = scalar_lea.vmem [#allocation6], %s122
          %s124 = smul.u32 4, %s15
          %s125 = ssub.s32 6, %s124
          %p126 = scmp.lt.s32.totalorder %s125, 4
          %s127 = scalar_select %p126, %s125, 4
          %s128 = smul.u32 512, %s127
          %s130 = ssub.s32 2048, %s128
          %131 = vsyncadd %s120, %s130
          %p132 = scmp.ne.s32.totalorder 0, %s128
          %s133 = smul.addr %s124, 128
          %s134 = scalar_lea.hbm %s1, %s133
          %s135 = smul.u32 %s127, 8
          %s136 = smul.u32 %s135, 4
          %s137 = sshll.u32 %s123, 4
          %s138 = int_to_ptr.vmem [resolvable:$true] %s137
          %s139 = sshll.u32 %s136, 4
          %143 = dma.hbm_to_vmem [thread:$0]  (%p132), %s134, %s139, %s138, %s120, 768, 512, %s135
        $region24: #{tpu_custom_call.1} parent=19 // pred_fallthru
          _
      $region20: #{tpu_custom_call.1} parent=5 // pred_fallthru
        _
      %p144 = scmp.le.s32.totalorder 1, %s15
      %p145 = scmp.lt.s32.totalorder %s15, 3
      %p146 = pnand %p144, %p145
      %p147 = pneg %p146
      // Predicated region
      $region25: #{tpu_custom_call.1} parent=5 // pred_check
        _
      $region26: #{tpu_custom_call.1} parent=5 // pred_check_branch
        %149 = sbr.rel (%p146) target = $region28
      $region27: #{tpu_custom_call.1} parent=5 // pred_region
        %s150 = ssub.s32 %s15, 1
        // Predicated region
        $region29: #{tpu_custom_call.1} parent=27 // pred_check
          %p151 = pneg %p36
        $region30: #{tpu_custom_call.1} parent=27 // pred_check_branch
          %153 = sbr.rel (%p151) target = $region32
        $region31: #{tpu_custom_call.1} parent=27 // pred_region
          %154 = dma.done [#allocation5], 16
        $region32: #{tpu_custom_call.1} parent=27 // pred_fallthru
          _
        %s155 = sand.u32 %s49, 1
        %s156 = scalar_lea.sflag [#allocation3], %s155
        %s157 = sand.u32 %s49, 1
        %s158 = smul.addr %s157, 128
        %s159 = scalar_lea.vmem [#allocation6], %s158
        // Predicated region
        $region33: #{tpu_custom_call.1} parent=27 // pred_check
          %p160 = pneg %p62
        $region34: #{tpu_custom_call.1} parent=27 // pred_check_branch
          %162 = sbr.rel (%p160) target = $region36
        $region35: #{tpu_custom_call.1} parent=27 // pred_region
          %163 = dma.done %s156, 2048
        $region36: #{tpu_custom_call.1} parent=27 // pred_fallthru
          _
        %164 = sfence
        %p165 = pneg %p36
        %p166 = pneg %p33
        %s167 = sand.u32 %s49, 1
        %s168 = scalar_lea.sflag [#allocation3], %s167
        %s169 = sand.u32 %s49, 1
        %s170 = smul.addr %s169, 128
        %s171 = scalar_lea.vmem [#allocation6], %s170
        %p172 = pneg %p62
        %p173 = pneg %p59
        %p174 = pneg %p88
        %p175 = pneg %p85
        %s176 = sand.u32 %s75, 1
        %s177 = scalar_lea.sflag [#allocation4], %s176
        %s178 = sand.u32 %s75, 1
        %s179 = smul.addr %s178, 32
        %s180 = scalar_lea.vmem [#allocation7], %s179
        %s181 = smul.u32 4, %s20
        %s182 = ssub.s32 6, %s181
        %p183 = scmp.lt.s32.totalorder %s182, 4
        %s184 = scalar_select %p183, %s182, 4
        %s185 = smul.u32 512, %s184
        %s186 = smul.u32 4, %s20
        %s187 = ssub.s32 6, %s186
        %p188 = scmp.lt.s32.totalorder %s187, 4
        %s189 = scalar_select %p188, %s187, 4
        %s190 = smul.u32 128, %s189
        %s191 = sld [smem:[#allocation2]]
        %s192 = sld [smem:[#allocation2 + $0x1]]
        %s193 = sld [smem:[#allocation2 + $0x2]]
        %s194 = sld [smem:[#allocation2 + $0x3]]
        %s195 = sld [smem:[#allocation2 + $0x4]]
        %s196 = sld [smem:[#allocation2 + $0x5]]
        %s197 = sld [smem:[#allocation2 + $0x6]]
        %s198 = sld [smem:[#allocation2 + $0x7]]
        %s199 = sld [smem:[#allocation2 + $0x8]]
        %s200 = sld [smem:[#allocation2 + $0x9]]
        %s201 = sld [smem:[#allocation2 + $0xa]]
        %s202 = sld [smem:[#allocation2 + $0xb]]
        %s203 = sld [smem:[#allocation2 + $0xc]]
        %v204 = vld [vmem:[%s159] sm:$0xff]
        %v205 = vld [vmem:[%s159 + $0x8] sm:$0xff]
        %v206 = vld [vmem:[%s159 + $0x10] sm:$0xff]
        %v207 = vld [vmem:[%s159 + $0x18] sm:$0xff]
        %v208 = vld [vmem:[%s159 + $0x20] sm:$0xff]
        %v209 = vld [vmem:[%s159 + $0x28] sm:$0xff]
        %v210 = vld [vmem:[%s159 + $0x30] sm:$0xff]
        %v211 = vld [vmem:[%s159 + $0x38] sm:$0xff]
        %v212 = vld [vmem:[%s159 + $0x40] sm:$0xff]
        %v213 = vld [vmem:[%s159 + $0x48] sm:$0xff]
        %v214 = vld [vmem:[%s159 + $0x50] sm:$0xff]
        %v215 = vld [vmem:[%s159 + $0x58] sm:$0xff]
        %v216 = vld [vmem:[%s159 + $0x60] sm:$0xff]
        %v217 = vld [vmem:[%s159 + $0x68] sm:$0xff]
        %v218 = vld [vmem:[%s159 + $0x70] sm:$0xff]
        %v219 = vld [vmem:[%s159 + $0x78] sm:$0xff]
        %v220 = vstv %s191
        %v221 = vmul.f32 %v204, %v220
        %v222 = vmul.f32 %v205, %v220
        %v223 = vmul.f32 %v206, %v220
        %v224 = vmul.f32 %v207, %v220
        %v225 = vstv %s193
        %v226 = vmul.f32 %v208, %v225
        %v227 = vmul.f32 %v209, %v225
        %v228 = vmul.f32 %v210, %v225
        %v229 = vmul.f32 %v211, %v225
        %v230 = vadd.f32 %v221, %v226
        %v231 = vadd.f32 %v222, %v227
        %v232 = vadd.f32 %v223, %v228
        %v233 = vadd.f32 %v224, %v229
        %v234 = vstv %s195
        %v235 = vmul.f32 %v212, %v234
        %v236 = vmul.f32 %v213, %v234
        %v237 = vmul.f32 %v214, %v234
        %v238 = vmul.f32 %v215, %v234
        %v239 = vadd.f32 %v230, %v235
        %v240 = vadd.f32 %v231, %v236
        %v241 = vadd.f32 %v232, %v237
        %v242 = vadd.f32 %v233, %v238
        %v243 = vstv %s197
        %v244 = vmul.f32 %v216, %v243
        %v245 = vmul.f32 %v217, %v243
        %v246 = vmul.f32 %v218, %v243
        %v247 = vmul.f32 %v219, %v243
        %v248 = vadd.f32 %v239, %v244
        %v249 = vadd.f32 %v240, %v245
        %v250 = vadd.f32 %v241, %v246
        %v251 = vadd.f32 %v242, %v247
        %v252 = vstv %s199
        %v253 = vadd.f32 %v248, %v252
        %v254 = vadd.f32 %v249, %v252
        %v255 = vadd.f32 %v250, %v252
        %v256 = vadd.f32 %v251, %v252
        %v257 = vmax.f32 %v253, 0.0
        %v258 = vmax.f32 %v254, 0.0
        %v259 = vmax.f32 %v255, 0.0
        %v260 = vmax.f32 %v256, 0.0
        %v261 = vstv %s192
        %v262 = vmul.f32 %v204, %v261
        %v263 = vmul.f32 %v205, %v261
        %v264 = vmul.f32 %v206, %v261
        %v265 = vmul.f32 %v207, %v261
        %v266 = vstv %s194
        %v267 = vmul.f32 %v208, %v266
        %v268 = vmul.f32 %v209, %v266
        %v269 = vmul.f32 %v210, %v266
        %v270 = vmul.f32 %v211, %v266
        %v271 = vadd.f32 %v262, %v267
        %v272 = vadd.f32 %v263, %v268
        %v273 = vadd.f32 %v264, %v269
        %v274 = vadd.f32 %v265, %v270
        %v275 = vstv %s196
        %v276 = vmul.f32 %v212, %v275
        %v277 = vmul.f32 %v213, %v275
        %v278 = vmul.f32 %v214, %v275
        %v279 = vmul.f32 %v215, %v275
        %v280 = vadd.f32 %v271, %v276
        %v281 = vadd.f32 %v272, %v277
        %v282 = vadd.f32 %v273, %v278
        %v283 = vadd.f32 %v274, %v279
        %v284 = vstv %s198
        %v285 = vmul.f32 %v216, %v284
        %v286 = vmul.f32 %v217, %v284
        %v287 = vmul.f32 %v218, %v284
        %v288 = vmul.f32 %v219, %v284
        %v289 = vadd.f32 %v280, %v285
        %v290 = vadd.f32 %v281, %v286
        %v291 = vadd.f32 %v282, %v287
        %v292 = vadd.f32 %v283, %v288
        %v293 = vstv %s200
        %v294 = vadd.f32 %v289, %v293
        %v295 = vadd.f32 %v290, %v293
        %v296 = vadd.f32 %v291, %v293
        %v297 = vadd.f32 %v292, %v293
        %v298 = vmax.f32 %v294, 0.0
        %v299 = vmax.f32 %v295, 0.0
        %v300 = vmax.f32 %v296, 0.0
        %v301 = vmax.f32 %v297, 0.0
        %v302 = vstv %s201
        %v303 = vmul.f32 %v257, %v302
        %v304 = vmul.f32 %v258, %v302
        %v305 = vmul.f32 %v259, %v302
        %v306 = vmul.f32 %v260, %v302
        %v307 = vstv %s202
        %v308 = vmul.f32 %v298, %v307
        %v309 = vmul.f32 %v299, %v307
        %v310 = vmul.f32 %v300, %v307
        %v311 = vmul.f32 %v301, %v307
        %v312 = vadd.f32 %v303, %v308
        %v313 = vadd.f32 %v304, %v309
        %v314 = vadd.f32 %v305, %v310
        %v315 = vadd.f32 %v306, %v311
        %v316 = vstv %s203
        %v317 = vadd.f32 %v312, %v316
        %v318 = vadd.f32 %v313, %v316
        %v319 = vadd.f32 %v314, %v316
        %v320 = vadd.f32 %v315, %v316
        %v321 = vsub.f32 0.0, %v317
        %v322 = vsub.f32 0.0, %v318
        %v323 = vsub.f32 0.0, %v319
        %v324 = vsub.f32 0.0, %v320
        %v325 = vmul.f32 %v321, 1.442695
        %v326 = vpow.pop %v325
        %v327 = vmul.f32 %v322, 1.442695
        %v328 = vpow.pop %v327
        %v329 = vmul.f32 %v323, 1.442695
        %v330 = vpow.pop %v329
        %v331 = vmul.f32 %v324, 1.442695
        %v332 = vpow.pop %v331
        %v333 = vadd.f32 %v326, 1.0
        %v334 = vadd.f32 %v328, 1.0
        %v335 = vadd.f32 %v330, 1.0
        %v336 = vadd.f32 %v332, 1.0
        %v337 = vrcp.pop %v333
        %v338 = vmul.f32 1.0, %v337
        %v339 = vrcp.pop %v334
        %v340 = vmul.f32 1.0, %v339
        %v341 = vrcp.pop %v335
        %v342 = vmul.f32 1.0, %v341
        %v343 = vrcp.pop %v336
        %v344 = vmul.f32 1.0, %v343
        %345 = vst [vmem:[%s180] sm:$0xff] %v338
        %346 = vst [vmem:[%s180 + $0x8] sm:$0xff] %v340
        %347 = vst [vmem:[%s180 + $0x10] sm:$0xff] %v342
        %348 = vst [vmem:[%s180 + $0x18] sm:$0xff] %v344
        %s349 = sand.u32 %s75, 1
        %s350 = scalar_lea.sflag [#allocation4], %s349
        %s351 = sand.u32 %s75, 1
        %s352 = smul.addr %s351, 32
        %s353 = scalar_lea.vmem [#allocation7], %s352
        // Predicated region
        $region37: #{tpu_custom_call.1} parent=27 // pred_check
          %p354 = pneg %p85
        $region38: #{tpu_custom_call.1} parent=27 // pred_check_branch
          %356 = sbr.rel (%p354) target = $region40
        $region39: #{tpu_custom_call.1} parent=27 // pred_region
          %s357 = smul.u32 4, %s20
          %s358 = ssub.s32 6, %s357
          %p359 = scmp.lt.s32.totalorder %s358, 4
          %s360 = scalar_select %p359, %s358, 4
          %s361 = smul.u32 128, %s360
          %s363 = ssub.s32 512, %s361
          %364 = vsyncadd %s350, %s363
          %p365 = scmp.ne.s32.totalorder 0, %s361
          %s366 = smul.addr %s357, 128
          %s367 = scalar_lea.hbm %s2, %s366
          %s368 = smul.u32 %s360, 8
          %s369 = sshll.u32 %s368, 4
          %s370 = sshll.u32 %s353, 4
          %s371 = int_to_ptr.vmem [resolvable:$true] %s370
          %373 = dma.vmem_to_hbm [thread:$0]  (%p365), %s371, %s369, %s367, %s350
        $region40: #{tpu_custom_call.1} parent=27 // pred_fallthru
          _
      $region28: #{tpu_custom_call.1} parent=5 // pred_fallthru
        _
      %p374 = scmp.le.s32.totalorder 2, %s15
      // Predicated region
      $region41: #{tpu_custom_call.1} parent=5 // pred_check
        %p375 = pneg %p374
      $region42: #{tpu_custom_call.1} parent=5 // pred_check_branch
        %377 = sbr.rel (%p375) target = $region44
      $region43: #{tpu_custom_call.1} parent=5 // pred_region
        %s378 = ssub.s32 %s15, 2
        // Predicated region
        $region45: #{tpu_custom_call.1} parent=43 // pred_check
          %p379 = pneg %p91
        $region46: #{tpu_custom_call.1} parent=43 // pred_check_branch
          %381 = sbr.rel (%p379) target = $region48
        $region47: #{tpu_custom_call.1} parent=43 // pred_region
          %s382 = sand.u32 %s76, 1
          %s383 = scalar_lea.sflag [#allocation4], %s382
          %s384 = sand.u32 %s76, 1
          %s385 = smul.addr %s384, 32
          %s386 = scalar_lea.vmem [#allocation7], %s385
          %387 = dma.done %s383, 512
        $region48: #{tpu_custom_call.1} parent=43 // pred_fallthru
          _
      $region44: #{tpu_custom_call.1} parent=5 // pred_fallthru
        _
    $region6: #{tpu_custom_call.1} parent=1 // loop_footer
      %s19 = sadd.s32 1, %s15
    $region7: #{tpu_custom_call.1} parent=1 // loop_footer_branch
      %14 = sbr.rel target = $region3
    $region8: #{tpu_custom_call.1} parent=1 // loop_exit
      _
    %388 = vsyncpa [#allocation3], 1
    %s389 = scalar_lea.sflag [#allocation3], 1
    %390 = vsyncpa %s389, 1
    %391 = vsyncpa [#allocation4], 1
    %s392 = scalar_lea.sflag [#allocation4], 1
    %393 = vsyncpa %s392, 1
    %394 = vsyncpa [#allocation5], 1
    %s395 = scalar_lea.sflag [#allocation5], 1
    %396 = vsyncpa %s395, 1

</llo_original>
